<compile_context>
chip_gen: v7x
topology: tpu7x:2x2x1
jax: 0.10.0
libtpu: 0.0.40
codegen_flags: <defaults>
</compile_context>

<pallas_src>
import functools

import jax
import jax.numpy as jnp
from jax.experimental import pallas as pl
from jax.experimental.pallas import tpu as pltpu

GAMMA = 0.5  # RBF bandwidth


def _round_up(x, m):
    return ((x + m - 1) // m) * m


def _kernel_regressor_kernel(xT_ref, xt_ref, alpha_ref, out_ref, *, exp_dtype):
    """One (test-tile, train-chunk) grid cell of the fused RBF regressor.

    xT_ref    : (D_aug, TQ)  augmented test features, transposed (lane-dense)
    xt_ref    : (TN, D_aug)  augmented train chunk
    alpha_ref : (1, TN)      dual coefficients for this chunk (row, lane-dense)
    out_ref   : (1, TQ)      f32 prediction row; resident accumulator across k
    """
    k = pl.program_id(1)

    @pl.when(k == 0)
    def _():
        out_ref[...] = jnp.zeros_like(out_ref)

    # -gamma * ||xt_j - x_i||^2 as a single MXU contraction (norms folded into
    # the augmented features in the wrapper).
    logits = jnp.dot(
        xt_ref[...], xT_ref[...], preferred_element_type=jnp.float32
    )  # (TN, TQ)

    # RBF kernel tile.  exp_dtype=bf16 halves EUP time on v6e/v7x and runs the
    # final matvec at full MXU rate; keep f32 (default) on v5e.
    k_tile = jnp.exp(logits.astype(exp_dtype)).astype(exp_dtype)  # (TN, TQ)

    # Partial matvec: (1, TN) @ (TN, TQ) -> (1, TQ), accumulate in f32.
    a_row = alpha_ref[...].astype(exp_dtype)
    out_ref[...] += jnp.dot(a_row, k_tile, preferred_element_type=jnp.float32)


@functools.partial(
    jax.jit, static_argnames=("tile_q", "tile_n", "exp_dtype")
)
def kernel_regressor_forward(
    x_test,
    x_train,
    alpha,
    *,
    gamma=GAMMA,
    tile_q=256,
    tile_n=512,
    exp_dtype=jnp.float32,
):
    """Pallas implementation of KernelRegressor.forward.

    Args:
      x_test : (n_test, d) float
      x_train: (n_train, d) float
      alpha  : (n_train,)  float (fitted dual coefficients)
    Returns:
      (n_test,) float32 predictions.
    """
    assert tile_q % 128 == 0 and tile_n % 128 == 0, "tiles must be multiples of 128"
    n_test, d = x_test.shape
    n_train, d2 = x_train.shape
    assert d == d2

    x_test = x_test.astype(jnp.float32)
    x_train = x_train.astype(jnp.float32)
    alpha = alpha.astype(jnp.float32)
    gamma = jnp.float32(gamma)

    # --- Hoisted (one-time) feature augmentation: fold all norm terms -------
    # xt_aug[j] = [2g*xt_j, -g||xt_j||^2, 1]    (n_train, d+2)
    # x_aug [i] = [x_i,      1,          -g||x_i||^2]  (n_test, d+2)
    # => xt_aug @ x_aug.T == -g * ||xt_j - x_i||^2
    xt_sq = jnp.sum(x_train * x_train, axis=1, keepdims=True)  # (n_train, 1)
    x_sq = jnp.sum(x_test * x_test, axis=1, keepdims=True)     # (n_test, 1)
    xt_aug = jnp.concatenate(
        [2.0 * gamma * x_train, -gamma * xt_sq, jnp.ones((n_train, 1), jnp.float32)],
        axis=1,
    )
    x_aug = jnp.concatenate(
        [x_test, jnp.ones((n_test, 1), jnp.float32), -gamma * x_sq], axis=1
    )
    d_aug = d + 2

    # --- Ragged sizes: shrink tiles for tiny problems, zero-pad the rest ----
    tq = min(tile_q, _round_up(n_test, 128))
    tn = min(tile_n, _round_up(n_train, 128))
    n_test_p = _round_up(n_test, tq)
    n_train_p = _round_up(n_train, tn)

    # Test features, transposed to (d_aug, n_test_p): lane-dense test axis,
    # no in-kernel transpose needed for the MXU contraction.
    x_aug_T = jnp.zeros((d_aug, n_test_p), jnp.float32).at[:, :n_test].set(x_aug.T)
    # Padded train rows are all-zero (logits 0 -> exp 1) but alpha there is 0,
    # so they contribute nothing.
    xt_aug_p = jnp.zeros((n_train_p, d_aug), jnp.float32).at[:n_train, :].set(xt_aug)
    alpha_row = jnp.zeros((1, n_train_p), jnp.float32).at[0, :n_train].set(alpha)

    grid = (n_test_p // tq, n_train_p // tn)

    out = pl.pallas_call(
        functools.partial(_kernel_regressor_kernel, exp_dtype=exp_dtype),
        out_shape=jax.ShapeDtypeStruct((1, n_test_p), jnp.float32),
        grid_spec=pltpu.PrefetchScalarGridSpec(
            num_scalar_prefetch=0,
            grid=grid,
            in_specs=[
                pl.BlockSpec((d_aug, tq), lambda i, k: (0, i)),   # test tile (T)
                pl.BlockSpec((tn, d_aug), lambda i, k: (k, 0)),   # train chunk
                pl.BlockSpec((1, tn), lambda i, k: (0, k)),       # alpha row chunk
            ],
            out_specs=pl.BlockSpec((1, tq), lambda i, k: (0, i)),  # resident acc
        ),
        compiler_params=pltpu.CompilerParams(
            # test axis parallel (2nd TC on v7x), train axis is the reduction.
            dimension_semantics=("parallel", "arbitrary"),
        ),
    )(x_aug_T, xt_aug_p, alpha_row)

    return out[0, :n_test]


def _reference_forward(x_test, x_train, alpha, gamma=GAMMA):
    """Pure-JAX reference matching the PyTorch forward semantics."""
    d2 = (
        jnp.sum(x_train * x_train, axis=1, keepdims=True)
        + jnp.sum(x_test * x_test, axis=1)[None, :]
        - 2.0 * x_train @ x_test.T
    )
    k_forward = jnp.exp(-gamma * d2)  # (n_train, n_test)
    return k_forward.T @ alpha        # (n_test,)


if __name__ == "__main__":
    key = jax.random.PRNGKey(0)

    # Case 1: small shapes (single tile after shrinking).
    k1, k2, k3, k4, k5, k6 = jax.random.split(key, 6)
    n_train, n_test, d = 64, 32, 16
    x_train = jax.random.normal(k1, (n_train, d), dtype=jnp.float32)
    alpha = jax.random.normal(k2, (n_train,), dtype=jnp.float32)
    x_test = jax.random.normal(k3, (n_test, d), dtype=jnp.float32)

    y_pred = kernel_regressor_forward(x_test, x_train, alpha)
    y_pred = jax.block_until_ready(y_pred)
    y_ref = _reference_forward(x_test, x_train, alpha)
    assert y_pred.shape == (n_test,)
    assert jnp.allclose(y_pred, y_ref, atol=1e-4, rtol=1e-4), (
        f"case1 max abs err = {jnp.max(jnp.abs(y_pred - y_ref))}"
    )

    # Case 2: ragged sizes exercising multiple test tiles + tiled train
    # reduction (padding path).
    n_train2, n_test2 = 300, 200
    x_train2 = jax.random.normal(k4, (n_train2, d), dtype=jnp.float32)
    alpha2 = jax.random.normal(k5, (n_train2,), dtype=jnp.float32)
    x_test2 = jax.random.normal(k6, (n_test2, d), dtype=jnp.float32)

    y_pred2 = kernel_regressor_forward(
        x_test2, x_train2, alpha2, tile_q=128, tile_n=128
    )
    y_pred2 = jax.block_until_ready(y_pred2)
    y_ref2 = _reference_forward(x_test2, x_train2, alpha2)
    assert y_pred2.shape == (n_test2,)
    assert jnp.allclose(y_pred2, y_ref2, atol=1e-4, rtol=1e-4), (
        f"case2 max abs err = {jnp.max(jnp.abs(y_pred2 - y_ref2))}"
    )

    print("KERNEL_OK")
</pallas_src>

<mosaic_0001>
module attributes {stable_mosaic.version = 11 : i64} {
  func.func @_kernel_regressor_kernel(%arg0: i32, %arg1: i32, %arg2: memref<18x128xf32, #tpu.memory_space<vmem>>, %arg3: memref<128x18xf32, #tpu.memory_space<vmem>>, %arg4: memref<1x128xf32, #tpu.memory_space<vmem>>, %arg5: memref<1x128xf32, #tpu.memory_space<vmem>>) attributes {dimension_semantics = [#tpu.dimension_semantics<parallel>, #tpu.dimension_semantics<arbitrary>], iteration_bounds = array<i64: 1, 1>, scalar_prefetch = 0 : i64, scratch_operands = 0 : i64, tpu.core_type = #tpu.core_type<tc>, window_params = [{transform_indices = @transform_0, window_bounds = array<i64: 18, 128>}, {transform_indices = @transform_1, window_bounds = array<i64: 128, 18>}, {transform_indices = @transform_2, window_bounds = array<i64: 1, 128>}, {transform_indices = @transform_3, window_bounds = array<i64: 1, 128>}]} {
    %c0_i32 = arith.constant 0 : i32
    %0 = arith.cmpi eq, %arg1, %c0_i32 : i32
    %1 = arith.extui %0 : i1 to i32
    %c0_i32_0 = arith.constant 0 : i32
    %2 = arith.cmpi ne, %1, %c0_i32_0 : i32
    scf.if %2 {
      %cst_11 = arith.constant 0.000000e+00 : f32
      %12 = vector.broadcast %cst_11 : f32 to vector<1x128xf32>
      %c0_12 = arith.constant 0 : index
      %c0_13 = arith.constant 0 : index
      %13 = vector.load %arg5[%c0_12, %c0_13] : memref<1x128xf32, #tpu.memory_space<vmem>>, vector<1x128xf32>
      tpu.vector_store %arg5[%c0_12, %c0_13], %12 {strides = array<i32>} : memref<1x128xf32, #tpu.memory_space<vmem>>, vector<1x128xf32>,
    } else {
    }
    %c0 = arith.constant 0 : index
    %c0_1 = arith.constant 0 : index
    %3 = vector.load %arg3[%c0, %c0_1] : memref<128x18xf32, #tpu.memory_space<vmem>>, vector<128x18xf32>
    %c0_2 = arith.constant 0 : index
    %c0_3 = arith.constant 0 : index
    %4 = vector.load %arg2[%c0_2, %c0_3] : memref<18x128xf32, #tpu.memory_space<vmem>>, vector<18x128xf32>
    %cst = arith.constant dense<0.000000e+00> : vector<128x128xf32>
    %5 = tpu.matmul %3, %4, %cst {dimension_numbers = #tpu.dot_dimension_numbers<[1], [0], [0], [1], [0, 0, 1, 1], [], []>} : vector<128x18xf32>, vector<18x128xf32>, vector<128x128xf32> -> vector<128x128xf32>
    %6 = math.exp %5 : vector<128x128xf32>
    %c0_4 = arith.constant 0 : index
    %c0_5 = arith.constant 0 : index
    %7 = vector.load %arg4[%c0_4, %c0_5] : memref<1x128xf32, #tpu.memory_space<vmem>>, vector<1x128xf32>
    %c0_6 = arith.constant 0 : index
    %c0_7 = arith.constant 0 : index
    %8 = vector.load %arg5[%c0_6, %c0_7] : memref<1x128xf32, #tpu.memory_space<vmem>>, vector<1x128xf32>
    %cst_8 = arith.constant dense<0.000000e+00> : vector<1x128xf32>
    %9 = tpu.matmul %7, %6, %cst_8 {dimension_numbers = #tpu.dot_dimension_numbers<[1], [0], [0], [1], [0, 0, 1, 1], [], []>} : vector<1x128xf32>, vector<128x128xf32>, vector<1x128xf32> -> vector<1x128xf32>
    %10 = arith.addf %8, %9 : vector<1x128xf32>
    %c0_9 = arith.constant 0 : index
    %c0_10 = arith.constant 0 : index
    %11 = vector.load %arg5[%c0_9, %c0_10] : memref<1x128xf32, #tpu.memory_space<vmem>>, vector<1x128xf32>
    tpu.vector_store %arg5[%c0_9, %c0_10], %10 {strides = array<i32>} : memref<1x128xf32, #tpu.memory_space<vmem>>, vector<1x128xf32>,
    return
  }
  func.func @transform_0(%arg0: i32, %arg1: i32) -> (i32, i32) {
    %c0_i32 = arith.constant 0 : i32
    %c0_i32_0 = arith.constant 0 : i32
    return %c0_i32, %arg0 : i32, i32
  }
  func.func @transform_1(%arg0: i32, %arg1: i32) -> (i32, i32) {
    %c0_i32 = arith.constant 0 : i32
    %c0_i32_0 = arith.constant 0 : i32
    return %arg1, %c0_i32 : i32, i32
  }
  func.func @transform_2(%arg0: i32, %arg1: i32) -> (i32, i32) {
    %c0_i32 = arith.constant 0 : i32
    %c0_i32_0 = arith.constant 0 : i32
    return %c0_i32, %arg1 : i32, i32
  }
  func.func @transform_3(%arg0: i32, %arg1: i32) -> (i32, i32) {
    %c0_i32 = arith.constant 0 : i32
    %c0_i32_0 = arith.constant 0 : i32
    return %c0_i32, %arg0 : i32, i32
  }
}

</mosaic_0001>

<llo_original>
// kernel: kernel_regressor_forward.1
$region0: #{kernel_regressor_forward.1}
  #allocation0 [shape = 'u32[]', space=smem, size = 0x4, offset = 0x4, fixed_abs, tag = 'smem constant byte address 0x4 - core index']
  #allocation1 [shape = 'u32[144,128]{1,0:T(1,128)}', space=vmem, size = 0x12000, scoped, tag = 'internal scratch']
  %s0 = inlined_call_operand.vmem [shape: f32[18,128], index: 0, kind: input, shape index: {}]
  %s1 = inlined_call_operand.vmem [shape: f32[128,18], index: 1, kind: input, shape index: {}]
  %s2 = inlined_call_operand.vmem [shape: f32[1,128], index: 2, kind: input, shape index: {}]
  %s3 = inlined_call_operand.vmem [shape: f32[1,128], index: 3, kind: output, shape index: {}]
  %s4 = sld [smem:[#allocation0]]
  $region26: #{kernel_regressor_forward.1} parent=0
    _
  %s6 = ssub.s32 1, %s4
  %s7 = scalar_select 0, %s6, %s4
  // Predicated region
  $region2: #{kernel_regressor_forward.1} parent=0 // pred_check
    _
  $region3: #{kernel_regressor_forward.1} parent=0 // pred_check_branch
    %9 = sbr.rel (0) target = $region5
  $region4: #{kernel_regressor_forward.1} parent=0 // pred_region
    _
  $region5: #{kernel_regressor_forward.1} parent=0 // pred_fallthru
    _
  // Predicated region
  $region6: #{kernel_regressor_forward.1} parent=0 // pred_check
    _
  $region7: #{kernel_regressor_forward.1} parent=0 // pred_check_branch
    %11 = sbr.rel (0) target = $region9
  $region8: #{kernel_regressor_forward.1} parent=0 // pred_region
    _
  $region9: #{kernel_regressor_forward.1} parent=0 // pred_fallthru
    _
  // Predicated region
  $region10: #{kernel_regressor_forward.1} parent=0 // pred_check
    _
  $region11: #{kernel_regressor_forward.1} parent=0 // pred_check_branch
    %13 = sbr.rel (0) target = $region13
  $region12: #{kernel_regressor_forward.1} parent=0 // pred_region
    _
  $region13: #{kernel_regressor_forward.1} parent=0 // pred_fallthru
    _
  %p14 = scmp.eq.s32.totalorder 0, 0
  // Predicated region
  $region14: #{kernel_regressor_forward.1} parent=0 // pred_check
    %p15 = pneg %p14
  $region15: #{kernel_regressor_forward.1} parent=0 // pred_check_branch
    %17 = sbr.rel (%p15) target = $region17
  $region16: #{kernel_regressor_forward.1} parent=0 // pred_region
    %18 = vst [vmem:[%s3] sm:$0x1] 0.0
  $region17: #{kernel_regressor_forward.1} parent=0 // pred_fallthru
    _
  %v19 = vld [vmem:[%s1] sm:$0xff]
  %v20 = vld [vmem:[%s1 + $0x8] sm:$0xff]
  %v21 = vld [vmem:[%s1 + $0x10] sm:$0xff]
  %v22 = vld [vmem:[%s1 + $0x18] sm:$0xff]
  %v23 = vld [vmem:[%s1 + $0x20] sm:$0xff]
  %v24 = vld [vmem:[%s1 + $0x28] sm:$0xff]
  %v25 = vld [vmem:[%s1 + $0x30] sm:$0xff]
  %v26 = vld [vmem:[%s1 + $0x38] sm:$0xff]
  %v27 = vld [vmem:[%s1 + $0x40] sm:$0xff]
  %v28 = vld [vmem:[%s1 + $0x48] sm:$0xff]
  %v29 = vld [vmem:[%s1 + $0x50] sm:$0xff]
  %v30 = vld [vmem:[%s1 + $0x58] sm:$0xff]
  %v31 = vld [vmem:[%s1 + $0x60] sm:$0xff]
  %v32 = vld [vmem:[%s1 + $0x68] sm:$0xff]
  %v33 = vld [vmem:[%s1 + $0x70] sm:$0xff]
  %v34 = vld [vmem:[%s1 + $0x78] sm:$0xff]
  %v35 = vld [vmem:[%s0] sm:$0xff]
  %v36 = vld [vmem:[%s0 + $0x8] sm:$0xff]
  %v37 = vld [vmem:[%s0 + $0x10] sm:$0x3]
  %vm38 = vcmask 146432
  %v40 = vsel %vm38, %v19, 0
  %v43 = vsel %vm38, %v20, 0
  %v46 = vsel %vm38, %v21, 0
  %v49 = vsel %vm38, %v22, 0
  %v52 = vsel %vm38, %v23, 0
  %v55 = vsel %vm38, %v24, 0
  %v58 = vsel %vm38, %v25, 0
  %v61 = vsel %vm38, %v26, 0
  %v64 = vsel %vm38, %v27, 0
  %v67 = vsel %vm38, %v28, 0
  %v70 = vsel %vm38, %v29, 0
  %v73 = vsel %vm38, %v30, 0
  %v76 = vsel %vm38, %v31, 0
  %v79 = vsel %vm38, %v32, 0
  %v82 = vsel %vm38, %v33, 0
  %v85 = vsel %vm38, %v34, 0
  %vm87 = vcmask 1041408
  %v89 = vsel %vm87, %v37, 0
  %91 = vmatprep.subr.mxu0 0.0
  %92 = vmatpush1.msra.mxu0 %v35
  %93 = vmatprep.subr.mxu0 0.0
  %94 = vmatpush1.msra.mxu0 %v36
  %95 = vmatprep.subr.mxu0 0.0
  %96 = vmatpush1.msra.mxu0 %v89
  %97 = vmatprep.subr.mxu0 0.0
  %98 = vmatpush1.msra.mxu0 0.0
  %99 = vmatprep.subr.mxu0 0.0
  %100 = vmatpush1.msra.mxu0 0.0
  %101 = vmatprep.subr.mxu0 0.0
  %102 = vmatpush1.msra.mxu0 0.0
  %103 = vmatprep.subr.mxu0 0.0
  %104 = vmatpush1.msra.mxu0 0.0
  %105 = vmatprep.subr.mxu0 0.0
  %106 = vmatpush1.msra.mxu0 0.0
  %107 = vmatprep.subr.mxu0 0.0
  %108 = vmatpush1.msra.mxu0 0.0
  %109 = vmatprep.subr.mxu0 0.0
  %110 = vmatpush1.msra.mxu0 0.0
  %111 = vmatprep.subr.mxu0 0.0
  %112 = vmatpush1.msra.mxu0 0.0
  %113 = vmatprep.subr.mxu0 0.0
  %114 = vmatpush1.msra.mxu0 0.0
  %115 = vmatprep.subr.mxu0 0.0
  %116 = vmatpush1.msra.mxu0 0.0
  %117 = vmatprep.subr.mxu0 0.0
  %118 = vmatpush1.msra.mxu0 0.0
  %119 = vmatprep.subr.mxu0 0.0
  %120 = vmatpush1.msra.mxu0 0.0
  %121 = vmatprep.subr.mxu0 0.0
  %122 = vmatpush1.msra.mxu0 0.0
  %123 = vmatprep.subr.mxu0 0.0
  %124 = vmatpush1.msra.mxu0 0.0
  %125 = vmatprep.subr.mxu0 0.0
  %126 = vmatpush1.msra.mxu0 0.0
  %127 = vmatprep.subr.mxu0 0.0
  %128 = vmatpush1.msra.mxu0 0.0
  %129 = vmatprep.subr.mxu0 0.0
  %130 = vmatpush1.msra.mxu0 0.0
  %131 = vmatprep.subr.mxu0 0.0
  %132 = vmatpush1.msra.mxu0 0.0
  %133 = vmatprep.subr.mxu0 0.0
  %134 = vmatpush1.msra.mxu0 0.0
  %135 = vmatprep.subr.mxu0 0.0
  %136 = vmatpush1.msra.mxu0 0.0
  %137 = vmatprep.subr.mxu0 0.0
  %138 = vmatpush1.msra.mxu0 0.0
  %139 = vmatprep.subr.mxu0 0.0
  %140 = vmatpush1.msra.mxu0 0.0
  %141 = vmatprep.subr.mxu0 0.0
  %142 = vmatpush1.msra.mxu0 0.0
  %143 = vmatprep.subr.mxu0 0.0
  %144 = vmatpush1.msra.mxu0 0.0
  %145 = vmatprep.subr.mxu0 0.0
  %146 = vmatpush1.msra.mxu0 0.0
  %147 = vmatprep.subr.mxu0 0.0
  %148 = vmatpush1.msra.mxu0 0.0
  %149 = vmatprep.subr.mxu0 0.0
  %150 = vmatpush1.msra.mxu0 0.0
  %151 = vmatprep.subr.mxu0 0.0
  %152 = vmatpush1.msra.mxu0 0.0
  %153 = vmatprep.subr.mxu0 0.0
  %154 = vmatpush1.msra.mxu0 0.0
  %155 = vmatprep.mubr.f32.mxu0 0.0
  %156 = vmatmul.mubr.f32.gmra.mrb[0].mxu0 %v40
  %v157 = vpop.f32.mrb[0].mxu0
  %v158 = vadd.f32 0.0, %v157
  %v159 = vpop.f32.mrb[0].mxu0
  %160 = vmatprep.mubr.f32.mxu0 0.0
  %161 = vmatmul.mubr.f32.gmra.mrb[0].mxu0 %v43
  %v162 = vpop.f32.mrb[0].mxu0
  %v163 = vadd.f32 0.0, %v162
  %v164 = vpop.f32.mrb[0].mxu0
  %165 = vmatprep.mubr.f32.mxu0 0.0
  %166 = vmatmul.mubr.f32.gmra.mrb[0].mxu0 %v46
  %v167 = vpop.f32.mrb[0].mxu0
  %v168 = vadd.f32 0.0, %v167
  %v169 = vpop.f32.mrb[0].mxu0
  %170 = vmatprep.mubr.f32.mxu0 0.0
  %171 = vmatmul.mubr.f32.gmra.mrb[0].mxu0 %v49
  %v172 = vpop.f32.mrb[0].mxu0
  %v173 = vadd.f32 0.0, %v172
  %v174 = vpop.f32.mrb[0].mxu0
  %175 = vmatprep.mubr.f32.mxu0 0.0
  %176 = vmatmul.mubr.f32.gmra.mrb[0].mxu0 %v52
  %v177 = vpop.f32.mrb[0].mxu0
  %v178 = vadd.f32 0.0, %v177
  %v179 = vpop.f32.mrb[0].mxu0
  %180 = vmatprep.mubr.f32.mxu0 0.0
  %181 = vmatmul.mubr.f32.gmra.mrb[0].mxu0 %v55
  %v182 = vpop.f32.mrb[0].mxu0
  %v183 = vadd.f32 0.0, %v182
  %v184 = vpop.f32.mrb[0].mxu0
  %185 = vmatprep.mubr.f32.mxu0 0.0
  %186 = vmatmul.mubr.f32.gmra.mrb[0].mxu0 %v58
  %v187 = vpop.f32.mrb[0].mxu0
  %v188 = vadd.f32 0.0, %v187
  %v189 = vpop.f32.mrb[0].mxu0
  %190 = vmatprep.mubr.f32.mxu0 0.0
  %191 = vmatmul.mubr.f32.gmra.mrb[0].mxu0 %v61
  %v192 = vpop.f32.mrb[0].mxu0
  %v193 = vadd.f32 0.0, %v192
  %v194 = vpop.f32.mrb[0].mxu0
  %195 = vmatprep.mubr.f32.mxu0 0.0
  %196 = vmatmul.mubr.f32.gmra.mrb[0].mxu0 %v64
  %v197 = vpop.f32.mrb[0].mxu0
  %v198 = vadd.f32 0.0, %v197
  %v199 = vpop.f32.mrb[0].mxu0
  %200 = vmatprep.mubr.f32.mxu0 0.0
  %201 = vmatmul.mubr.f32.gmra.mrb[0].mxu0 %v67
  %v202 = vpop.f32.mrb[0].mxu0
  %v203 = vadd.f32 0.0, %v202
  %v204 = vpop.f32.mrb[0].mxu0
  %205 = vmatprep.mubr.f32.mxu0 0.0
  %206 = vmatmul.mubr.f32.gmra.mrb[0].mxu0 %v70
  %v207 = vpop.f32.mrb[0].mxu0
  %v208 = vadd.f32 0.0, %v207
  %v209 = vpop.f32.mrb[0].mxu0
  %210 = vmatprep.mubr.f32.mxu0 0.0
  %211 = vmatmul.mubr.f32.gmra.mrb[0].mxu0 %v73
  %v212 = vpop.f32.mrb[0].mxu0
  %v213 = vadd.f32 0.0, %v212
  %v214 = vpop.f32.mrb[0].mxu0
  %215 = vmatprep.mubr.f32.mxu0 0.0
  %216 = vmatmul.mubr.f32.gmra.mrb[0].mxu0 %v76
  %v217 = vpop.f32.mrb[0].mxu0
  %v218 = vadd.f32 0.0, %v217
  %v219 = vpop.f32.mrb[0].mxu0
  %220 = vmatprep.mubr.f32.mxu0 0.0
  %221 = vmatmul.mubr.f32.gmra.mrb[0].mxu0 %v79
  %v222 = vpop.f32.mrb[0].mxu0
  %v223 = vadd.f32 0.0, %v222
  %v224 = vpop.f32.mrb[0].mxu0
  %225 = vmatprep.mubr.f32.mxu0 0.0
  %226 = vmatmul.mubr.f32.gmra.mrb[0].mxu0 %v82
  %v227 = vpop.f32.mrb[0].mxu0
  %v228 = vadd.f32 0.0, %v227
  %v229 = vpop.f32.mrb[0].mxu0
  %230 = vmatprep.mubr.f32.mxu0 0.0
  %231 = vmatmul.mubr.f32.gmra.mrb[0].mxu0 %v85
  %v232 = vpop.f32.mrb[0].mxu0
  %v233 = vadd.f32 0.0, %v232
  %v234 = vpop.f32.mrb[0].mxu0
  %235 = vdwg.mxu0
  %v236 = vmul.f32 %v158, 1.442695
  %v237 = vpow.pop %v236
  %v238 = vmul.f32 %v163, 1.442695
  %v239 = vpow.pop %v238
  %v240 = vmul.f32 %v168, 1.442695
  %v241 = vpow.pop %v240
  %v242 = vmul.f32 %v173, 1.442695
  %v243 = vpow.pop %v242
  %v244 = vmul.f32 %v178, 1.442695
  %v245 = vpow.pop %v244
  %v246 = vmul.f32 %v183, 1.442695
  %v247 = vpow.pop %v246
  %v248 = vmul.f32 %v188, 1.442695
  %v249 = vpow.pop %v248
  %v250 = vmul.f32 %v193, 1.442695
  %v251 = vpow.pop %v250
  %v252 = vmul.f32 %v198, 1.442695
  %v253 = vpow.pop %v252
  %v254 = vmul.f32 %v203, 1.442695
  %v255 = vpow.pop %v254
  %v256 = vmul.f32 %v208, 1.442695
  %v257 = vpow.pop %v256
  %v258 = vmul.f32 %v213, 1.442695
  %v259 = vpow.pop %v258
  %v260 = vmul.f32 %v218, 1.442695
  %v261 = vpow.pop %v260
  %v262 = vmul.f32 %v223, 1.442695
  %v263 = vpow.pop %v262
  %v264 = vmul.f32 %v228, 1.442695
  %v265 = vpow.pop %v264
  %v266 = vmul.f32 %v233, 1.442695
  %v267 = vpow.pop %v266
  %v268 = vld [vmem:[%s2] sm:$0x1]
  %v269 = vld [vmem:[%s3] sm:$0x1]
  %270 = vmatprep.subr.mxu0 0.0
  %271 = vmatpush1.msra.mxu0 %v237
  %272 = vmatprep.subr.mxu0 0.0
  %273 = vmatpush1.msra.mxu0 %v239
  %274 = vmatprep.subr.mxu0 0.0
  %275 = vmatpush1.msra.mxu0 %v241
  %276 = vmatprep.subr.mxu0 0.0
  %277 = vmatpush1.msra.mxu0 %v243
  %278 = vmatprep.subr.mxu0 0.0
  %279 = vmatpush1.msra.mxu0 %v245
  %280 = vmatprep.subr.mxu0 0.0
  %281 = vmatpush1.msra.mxu0 %v247
  %282 = vmatprep.subr.mxu0 0.0
  %283 = vmatpush1.msra.mxu0 %v249
  %284 = vmatprep.subr.mxu0 0.0
  %285 = vmatpush1.msra.mxu0 %v251
  %286 = vmatprep.subr.mxu0 0.0
  %287 = vmatpush1.msra.mxu0 %v253
  %288 = vmatprep.subr.mxu0 0.0
  %289 = vmatpush1.msra.mxu0 %v255
  %290 = vmatprep.subr.mxu0 0.0
  %291 = vmatpush1.msra.mxu0 %v257
  %292 = vmatprep.subr.mxu0 0.0
  %293 = vmatpush1.msra.mxu0 %v259
  %294 = vmatprep.subr.mxu0 0.0
  %295 = vmatpush1.msra.mxu0 %v261
  %296 = vmatprep.subr.mxu0 0.0
  %297 = vmatpush1.msra.mxu0 %v263
  %298 = vmatprep.subr.mxu0 0.0
  %299 = vmatpush1.msra.mxu0 %v265
  %300 = vmatprep.subr.mxu0 0.0
  %301 = vmatpush1.msra.mxu0 %v267
  %302 = vmatprep.subr.mxu0 0.0
  %303 = vmatpush1.msra.mxu0 0.0
  %304 = vmatprep.subr.mxu0 0.0
  %305 = vmatpush1.msra.mxu0 0.0
  %306 = vmatprep.subr.mxu0 0.0
  %307 = vmatpush1.msra.mxu0 0.0
  %308 = vmatprep.subr.mxu0 0.0
  %309 = vmatpush1.msra.mxu0 0.0
  %310 = vmatprep.subr.mxu0 0.0
  %311 = vmatpush1.msra.mxu0 0.0
  %312 = vmatprep.subr.mxu0 0.0
  %313 = vmatpush1.msra.mxu0 0.0
  %314 = vmatprep.subr.mxu0 0.0
  %315 = vmatpush1.msra.mxu0 0.0
  %316 = vmatprep.subr.mxu0 0.0
  %317 = vmatpush1.msra.mxu0 0.0
  %318 = vmatprep.subr.mxu0 0.0
  %319 = vmatpush1.msra.mxu0 0.0
  %320 = vmatprep.subr.mxu0 0.0
  %321 = vmatpush1.msra.mxu0 0.0
  %322 = vmatprep.subr.mxu0 0.0
  %323 = vmatpush1.msra.mxu0 0.0
  %324 = vmatprep.subr.mxu0 0.0
  %325 = vmatpush1.msra.mxu0 0.0
  %326 = vmatprep.subr.mxu0 0.0
  %327 = vmatpush1.msra.mxu0 0.0
  %328 = vmatprep.subr.mxu0 0.0
  %329 = vmatpush1.msra.mxu0 0.0
  %330 = vmatprep.subr.mxu0 0.0
  %331 = vmatpush1.msra.mxu0 0.0
  %332 = vmatprep.subr.mxu0 0.0
  %333 = vmatpush1.msra.mxu0 0.0
  %334 = vmatprep.mubr.f32.mxu0 0.0
  %335 = vmatmul.mubr.f32.gmra.mrb[0].mxu0 %v268
  %v336 = vpop.f32.mrb[0].mxu0
  %v337 = vadd.f32 0.0, %v336
  %v338 = vpop.f32.mrb[0].mxu0
  %339 = vdwg.mxu0
  %v340 = vadd.f32 %v269, %v337
  %341 = vst [vmem:[%s3] sm:$0x1] %v340
  // Predicated region
  $region18: #{kernel_regressor_forward.1} parent=0 // pred_check
    _
  $region19: #{kernel_regressor_forward.1} parent=0 // pred_check_branch
    %343 = sbr.rel (0) target = $region21
  $region20: #{kernel_regressor_forward.1} parent=0 // pred_region
    _
  $region21: #{kernel_regressor_forward.1} parent=0 // pred_fallthru
    _
  // Predicated region
  $region22: #{kernel_regressor_forward.1} parent=0 // pred_check
    _
  $region23: #{kernel_regressor_forward.1} parent=0 // pred_check_branch
    %345 = sbr.rel (0) target = $region25
  $region24: #{kernel_regressor_forward.1} parent=0 // pred_region
    _
  $region25: #{kernel_regressor_forward.1} parent=0 // pred_fallthru
    _

</llo_original>
